<compile_context>
chip_gen: v7x
topology: tpu7x:2x2x1
jax: 0.10.0
libtpu: 0.0.40
codegen_flags: <defaults>
</compile_context>

<pallas_src>
import functools

import jax
import jax.numpy as jnp
from jax.experimental import pallas as pl
from jax.experimental.pallas import tpu as pltpu

_LANE = 128


def _vmem_capacity_bytes() -> int:
    try:
        return int(pltpu.get_tpu_info().vmem_capacity_bytes)
    except Exception:
        return 64 * 1024 * 1024  # conservative fallback (v7x per-core VMEM)


def _excitation_col(mean_col, w1_ref, b1_ref, w2_ref, b2_ref):
    """mean_col: (C, 1) f32 -> per-channel scale (C, 1) f32.

    Weights stay in the PyTorch nn.Linear (out_features, in_features) layout and
    everything is kept column-major (C on sublanes) so no in-kernel relayout of
    the scale is needed before the lane-broadcast multiply."""
    h = jnp.dot(w1_ref[...], mean_col, preferred_element_type=jnp.float32) + b1_ref[...]
    h = jnp.maximum(h, 0.0)                                                   # (Cr, 1)
    s = jnp.dot(w2_ref[...], h, preferred_element_type=jnp.float32) + b2_ref[...]
    return jax.nn.sigmoid(s)                                                  # (C, 1)


# --------------------------- fused single-pass path ---------------------------

def _se_fused_kernel(x_ref, w1_ref, b1_ref, w2_ref, b2_ref, o_ref, *, inv_hw):
    x = x_ref[...]                                                            # (1, C, HW)
    mean = jnp.sum(x.astype(jnp.float32), axis=-1, keepdims=True) * inv_hw    # (1, C, 1)
    s = _excitation_col(mean[0], w1_ref, b1_ref, w2_ref, b2_ref)              # (C, 1)
    # Multiply in the streamed dtype (bf16 stays bf16 on v6e/v7x; f32 unchanged).
    o_ref[...] = (x * s[None].astype(x.dtype)).astype(o_ref.dtype)


# --------------------------- two-pass streaming path --------------------------

def _se_reduce_kernel(x_ref, w1_ref, b1_ref, w2_ref, b2_ref, s_ref, acc_ref,
                      *, inv_hw, hw, hw_tile, n_groups):
    t = pl.program_id(1)

    @pl.when(t == 0)
    def _():
        acc_ref[...] = jnp.zeros_like(acc_ref)

    xt = x_ref[0].astype(jnp.float32)                                         # (C, hw_tile)

    if hw % hw_tile != 0:
        # Last spatial tile is ragged: the out-of-bounds lanes of the block hold
        # undefined data -> mask them before accumulating.
        lane = jax.lax.broadcasted_iota(jnp.int32, xt.shape, 1)
        xt = jnp.where(t * hw_tile + lane < hw, xt, 0.0)

    if n_groups > 0:
        # VPU-only accumulation of aligned 128-lane groups; the cross-lane reduce
        # is deferred to the finalize branch (keeps the streaming loop off the XLU).
        for g in range(n_groups):
            acc_ref[...] += xt[:, g * _LANE:(g + 1) * _LANE]
    else:
        acc_ref[...] += jnp.sum(xt, axis=-1, keepdims=True)

    @pl.when(t == pl.num_programs(1) - 1)
    def _():
        mean = jnp.sum(acc_ref[...], axis=-1, keepdims=True) * inv_hw         # (C, 1)
        s = _excitation_col(mean, w1_ref, b1_ref, w2_ref, b2_ref)             # (C, 1)
        s_ref[...] = s[None]                                                  # (1, C, 1)


def _se_scale_kernel(x_ref, s_ref, o_ref):
    x = x_ref[...]                                                            # (1, C, tile)
    o_ref[...] = (x * s_ref[...].astype(x.dtype)).astype(o_ref.dtype)


# ----------------------------------- wrapper ----------------------------------

def se_block(x_nchw, w1, b1, w2, b2, *,
             max_tile_bytes=4 * 1024 * 1024,
             fuse_bytes=None,
             donate_x=False):
    """x_nchw: (B, C, H, W).  w1: (Cr, C), b1: (Cr,), w2: (C, Cr), b2: (C,)
    (PyTorch nn.Linear layout: weight is (out_features, in_features))."""
    B, C, H, W = x_nchw.shape
    Cr = w1.shape[0]
    HW = H * W
    dtype = x_nchw.dtype
    itemsize = jnp.dtype(dtype).itemsize
    img_bytes = C * HW * itemsize

    vmem_cap = _vmem_capacity_bytes()
    if fuse_bytes is None:
        # Fused path keeps ~4 image-sized buffers (double-buffered in + out) in
        # scoped VMEM, so gate on ~1/5 of physical VMEM (generation-aware).
        fuse_bytes = vmem_cap // 5

    # Collapse the spatial dims; contiguous collapse, free under jit.
    x = x_nchw.reshape(B, C, HW)

    # Tiny MLP params, kept f32, original (out, in) orientation; biases as columns.
    w1_f = w1.astype(jnp.float32)                 # (Cr, C)
    w2_f = w2.astype(jnp.float32)                 # (C, Cr)
    b1_c = b1.reshape(Cr, 1).astype(jnp.float32)  # (Cr, 1)
    b2_c = b2.reshape(C, 1).astype(jnp.float32)   # (C, 1)
    w_args = (w1_f, b1_c, w2_f, b2_c)
    w_specs = [pl.BlockSpec(a.shape, lambda *_: (0, 0)) for a in w_args]

    io_alias = {0: 0} if donate_x else {}

    # ------------------------- fused single-pass path -------------------------
    if img_bytes <= fuse_bytes:
        vmem_limit = min(int(vmem_cap * 0.9),
                         max(32 * 1024 * 1024, 4 * img_bytes + 4 * 1024 * 1024))
        img_spec = pl.BlockSpec((1, C, HW), lambda b: (b, 0, 0))
        out = pl.pallas_call(
            functools.partial(_se_fused_kernel, inv_hw=1.0 / HW),
            out_shape=jax.ShapeDtypeStruct((B, C, HW), dtype),
            grid_spec=pltpu.PrefetchScalarGridSpec(
                num_scalar_prefetch=0,
                grid=(B,),
                in_specs=[img_spec] + w_specs,
                out_specs=img_spec),
            compiler_params=pltpu.CompilerParams(
                dimension_semantics=("parallel",),
                vmem_limit_bytes=vmem_limit),
            input_output_aliases=io_alias,
        )(x, *w_args)
        return out.reshape(B, C, H, W)

    # --------------------------- two-pass streaming ---------------------------
    lanes_budget = (max_tile_bytes // max(C * itemsize, 1)) // _LANE * _LANE
    hw_tile = int(max(_LANE, min(lanes_budget, 8192)))
    if HW <= hw_tile:
        hw_tile = HW                      # single full-extent block (exempt from 128 rule)
    n_t = pl.cdiv(HW, hw_tile)
    block_bytes = C * hw_tile * itemsize
    n_groups = hw_tile // _LANE if hw_tile % _LANE == 0 else 0
    acc_shape = (C, _LANE) if n_groups else (C, 1)

    # Pass-2 footprint ~ 2*in + 2*out blocks (+ tiny s); raise the scoped limit
    # accordingly (v5e default is only 16 MiB) but never past physical VMEM.
    vmem_limit = min(int(vmem_cap * 0.9),
                     max(32 * 1024 * 1024, 5 * block_bytes + 4 * 1024 * 1024))

    x_spec = pl.BlockSpec((1, C, hw_tile), lambda b, t: (b, 0, t))
    s_spec = pl.BlockSpec((1, C, 1), lambda b, t: (b, 0, 0))

    # Pass 1: spatial mean + excitation MLP -> per-channel scale (B, C, 1).
    s = pl.pallas_call(
        functools.partial(_se_reduce_kernel, inv_hw=1.0 / HW, hw=HW,
                          hw_tile=hw_tile, n_groups=n_groups),
        out_shape=jax.ShapeDtypeStruct((B, C, 1), jnp.float32),
        grid_spec=pltpu.PrefetchScalarGridSpec(
            num_scalar_prefetch=0,
            grid=(B, n_t),
            in_specs=[x_spec] + w_specs,
            out_specs=s_spec,
            scratch_shapes=[pltpu.VMEM(acc_shape, jnp.float32)]),
        compiler_params=pltpu.CompilerParams(
            dimension_semantics=("parallel", "arbitrary"),
            vmem_limit_bytes=vmem_limit),
    )(x, *w_args)

    # Pass 2: elementwise rescale, fully tiled / double-buffered.
    out = pl.pallas_call(
        _se_scale_kernel,
        out_shape=jax.ShapeDtypeStruct((B, C, HW), dtype),
        grid_spec=pltpu.PrefetchScalarGridSpec(
            num_scalar_prefetch=0,
            grid=(B, n_t),
            in_specs=[x_spec, s_spec],
            out_specs=x_spec),
        compiler_params=pltpu.CompilerParams(
            dimension_semantics=("parallel", "parallel"),
            vmem_limit_bytes=vmem_limit),
        input_output_aliases=io_alias,
    )(x, s)
    return out.reshape(B, C, H, W)


def se_block_ref(x_nchw, w1, b1, w2, b2):
    """Pure-JAX reference matching the PyTorch forward."""
    y = jnp.mean(x_nchw, axis=(2, 3))                                         # (B, C)
    y = jnp.maximum(y @ w1.T + b1, 0.0)
    y = jax.nn.sigmoid(y @ w2.T + b2)
    return x_nchw * y[:, :, None, None]


if __name__ == "__main__":
    def make_params(C, reduction, key):
        Cr = C // reduction
        k1, k2, k3, k4 = jax.random.split(key, 4)
        w1 = 0.1 * jax.random.normal(k1, (Cr, C), dtype=jnp.float32)
        b1 = 0.1 * jax.random.normal(k2, (Cr,), dtype=jnp.float32)
        w2 = 0.1 * jax.random.normal(k3, (C, Cr), dtype=jnp.float32)
        b2 = 0.1 * jax.random.normal(k4, (C,), dtype=jnp.float32)
        return w1, b1, w2, b2

    def run_case(B, C, H, W, reduction, key, **kw):
        kx, kp = jax.random.split(key)
        x = jax.random.normal(kx, (B, C, H, W), dtype=jnp.float32)
        w1, b1, w2, b2 = make_params(C, reduction, kp)
        fn = jax.jit(functools.partial(se_block, **kw))
        out = jax.block_until_ready(fn(x, w1, b1, w2, b2))
        ref = se_block_ref(x, w1, b1, w2, b2)
        assert out.shape == (B, C, H, W)
        assert jnp.allclose(out, ref, atol=1e-4, rtol=1e-5), \
            f"mismatch vs reference (B={B}, C={C}, H={H}, W={W})"

    key = jax.random.PRNGKey(0)
    k1, k2, k3 = jax.random.split(key, 3)
    # Fused single-pass path (whole image resident in VMEM): HW = 1024, C = 128.
    run_case(2, 128, 32, 32, 16, k1)
    # Fused path with ragged HW (full-extent 49-lane block, no padding anywhere).
    run_case(2, 32, 7, 7, 16, k2)
    # Forced two-pass streaming path: HW = 400 -> 4 tiles of 128 lanes with a
    # ragged last tile (exercises masked reduce + dropped out-of-bounds writes).
    run_case(2, 16, 20, 20, 4, k3, fuse_bytes=0, max_tile_bytes=8 * 1024)
    print("KERNEL_OK")
</pallas_src>

<mosaic_0001>
module attributes {stable_mosaic.version = 11 : i64} {
  func.func @_se_fused_kernel(%arg0: i32, %arg1: memref<1x128x1024xf32, #tpu.memory_space<vmem>>, %arg2: memref<8x128xf32, #tpu.memory_space<vmem>>, %arg3: memref<8x1xf32, #tpu.memory_space<vmem>>, %arg4: memref<128x8xf32, #tpu.memory_space<vmem>>, %arg5: memref<128x1xf32, #tpu.memory_space<vmem>>, %arg6: memref<1x128x1024xf32, #tpu.memory_space<vmem>>) attributes {dimension_semantics = [#tpu.dimension_semantics<parallel>], iteration_bounds = array<i64: 2>, scalar_prefetch = 0 : i64, scratch_operands = 0 : i64, tpu.core_type = #tpu.core_type<tc>, window_params = [{transform_indices = @transform_0, window_bounds = array<i64: 1, 128, 1024>}, {pipeline_mode = #tpu.pipeline_mode<synchronous>, transform_indices = @transform_1, window_bounds = array<i64: 8, 128>}, {pipeline_mode = #tpu.pipeline_mode<synchronous>, transform_indices = @transform_2, window_bounds = array<i64: 8, 1>}, {pipeline_mode = #tpu.pipeline_mode<synchronous>, transform_indices = @transform_3, window_bounds = array<i64: 128, 8>}, {pipeline_mode = #tpu.pipeline_mode<synchronous>, transform_indices = @transform_4, window_bounds = array<i64: 128, 1>}, {transform_indices = @transform_5, window_bounds = array<i64: 1, 128, 1024>}]} {
    %c0 = arith.constant 0 : index
    %c0_0 = arith.constant 0 : index
    %c0_1 = arith.constant 0 : index
    %0 = vector.load %arg1[%c0, %c0_0, %c0_1] : memref<1x128x1024xf32, #tpu.memory_space<vmem>>, vector<1x128x1024xf32>
    %cst = arith.constant dense<0.000000e+00> : vector<1x128xf32>
    %1 = vector.multi_reduction <add>, %0, %cst [2] : vector<1x128x1024xf32> to vector<1x128xf32>
    %2 = vector.shape_cast %1 : vector<1x128xf32> to vector<1x128x1xf32>
    %cst_2 = arith.constant 9.765625E-4 : f32
    %3 = vector.broadcast %cst_2 : f32 to vector<1x128x1xf32>
    %4 = arith.mulf %2, %3 : vector<1x128x1xf32>
    %5 = vector.shape_cast %4 : vector<1x128x1xf32> to vector<128x1xf32>
    %c0_3 = arith.constant 0 : index
    %c0_4 = arith.constant 0 : index
    %6 = vector.load %arg2[%c0_3, %c0_4] : memref<8x128xf32, #tpu.memory_space<vmem>>, vector<8x128xf32>
    %cst_5 = arith.constant dense<0.000000e+00> : vector<8x1xf32>
    %7 = tpu.matmul %6, %5, %cst_5 {dimension_numbers = #tpu.dot_dimension_numbers<[1], [0], [0], [1], [0, 0, 1, 1], [], []>} : vector<8x128xf32>, vector<128x1xf32>, vector<8x1xf32> -> vector<8x1xf32>
    %c0_6 = arith.constant 0 : index
    %c0_7 = arith.constant 0 : index
    %8 = vector.load %arg3[%c0_6, %c0_7] : memref<8x1xf32, #tpu.memory_space<vmem>>, vector<8x1xf32>
    %9 = arith.addf %7, %8 : vector<8x1xf32>
    %cst_8 = arith.constant 0.000000e+00 : f32
    %10 = vector.broadcast %cst_8 : f32 to vector<8x1xf32>
    %11 = arith.maximumf %9, %10 : vector<8x1xf32>
    %c0_9 = arith.constant 0 : index
    %c0_10 = arith.constant 0 : index
    %12 = vector.load %arg4[%c0_9, %c0_10] : memref<128x8xf32, #tpu.memory_space<vmem>>, vector<128x8xf32>
    %cst_11 = arith.constant dense<0.000000e+00> : vector<128x1xf32>
    %13 = tpu.matmul %12, %11, %cst_11 {dimension_numbers = #tpu.dot_dimension_numbers<[1], [0], [0], [1], [0, 0, 1, 1], [], []>} : vector<128x8xf32>, vector<8x1xf32>, vector<128x1xf32> -> vector<128x1xf32>
    %c0_12 = arith.constant 0 : index
    %c0_13 = arith.constant 0 : index
    %14 = vector.load %arg5[%c0_12, %c0_13] : memref<128x1xf32, #tpu.memory_space<vmem>>, vector<128x1xf32>
    %15 = arith.addf %13, %14 : vector<128x1xf32>
    %16 = arith.negf %15 : vector<128x1xf32>
    %17 = math.exp %16 : vector<128x1xf32>
    %cst_14 = arith.constant 1.000000e+00 : f32
    %18 = vector.broadcast %cst_14 : f32 to vector<128x1xf32>
    %19 = arith.addf %18, %17 : vector<128x1xf32>
    %20 = arith.divf %18, %19 : vector<128x1xf32>
    %21 = vector.shape_cast %20 : vector<128x1xf32> to vector<1x128x1xf32>
    %22 = vector.broadcast %21 : vector<1x128x1xf32> to vector<1x128x1024xf32>
    %23 = arith.mulf %0, %22 : vector<1x128x1024xf32>
    %c0_15 = arith.constant 0 : index
    %c0_16 = arith.constant 0 : index
    %c0_17 = arith.constant 0 : index
    %24 = vector.load %arg6[%c0_15, %c0_16, %c0_17] : memref<1x128x1024xf32, #tpu.memory_space<vmem>>, vector<1x128x1024xf32>
    tpu.vector_store %arg6[%c0_15, %c0_16, %c0_17], %23 {strides = array<i32>} : memref<1x128x1024xf32, #tpu.memory_space<vmem>>, vector<1x128x1024xf32>,
    return
  }
  func.func @transform_0(%arg0: i32) -> (i32, i32, i32) {
    %c0_i32 = arith.constant 0 : i32
    %c0_i32_0 = arith.constant 0 : i32
    %c0_i32_1 = arith.constant 0 : i32
    return %arg0, %c0_i32, %c0_i32_0 : i32, i32, i32
  }
  func.func @transform_1(%arg0: i32) -> (i32, i32) {
    %c0_i32 = arith.constant 0 : i32
    %c0_i32_0 = arith.constant 0 : i32
    %c0_i32_1 = arith.constant 0 : i32
    return %c0_i32, %c0_i32_0 : i32, i32
  }
  func.func @transform_2(%arg0: i32) -> (i32, i32) {
    %c0_i32 = arith.constant 0 : i32
    %c0_i32_0 = arith.constant 0 : i32
    %c0_i32_1 = arith.constant 0 : i32
    return %c0_i32, %c0_i32_0 : i32, i32
  }
  func.func @transform_3(%arg0: i32) -> (i32, i32) {
    %c0_i32 = arith.constant 0 : i32
    %c0_i32_0 = arith.constant 0 : i32
    %c0_i32_1 = arith.constant 0 : i32
    return %c0_i32, %c0_i32_0 : i32, i32
  }
  func.func @transform_4(%arg0: i32) -> (i32, i32) {
    %c0_i32 = arith.constant 0 : i32
    %c0_i32_0 = arith.constant 0 : i32
    %c0_i32_1 = arith.constant 0 : i32
    return %c0_i32, %c0_i32_0 : i32, i32
  }
  func.func @transform_5(%arg0: i32) -> (i32, i32, i32) {
    %c0_i32 = arith.constant 0 : i32
    %c0_i32_0 = arith.constant 0 : i32
    %c0_i32_1 = arith.constant 0 : i32
    return %arg0, %c0_i32, %c0_i32_0 : i32, i32, i32
  }
}

</mosaic_0001>

<llo_original>
// kernel: se_block.1
$region0: #{se_block.1}
  #allocation0 [shape = 'u32[]', space=smem, size = 0x4, offset = 0x4, fixed_abs, tag = 'smem constant byte address 0x4 - core index']
  #allocation1 [shape = 'u32[144,128]{1,0:T(1,128)}', space=vmem, size = 0x12000, scoped, tag = 'internal scratch']
  %s0 = inlined_call_operand.vmem [shape: f32[2,128,1024], index: 0, kind: input, shape index: {}]
  %s1 = inlined_call_operand.vmem [shape: f32[8,128], index: 1, kind: input, shape index: {}]
  %s2 = inlined_call_operand.vmem [shape: f32[8,1], index: 2, kind: input, shape index: {}]
  %s3 = inlined_call_operand.vmem [shape: f32[128,8], index: 3, kind: input, shape index: {}]
  %s4 = inlined_call_operand.vmem [shape: f32[128,1], index: 4, kind: input, shape index: {}]
  %s5 = inlined_call_operand.vmem [shape: f32[2,128,1024], index: 5, kind: output, shape index: {}]
  %s6 = sld [smem:[#allocation0]]
  $region53: #{se_block.1} parent=0
    _
  %s8 = ssub.s32 1, %s6
  %s9 = scalar_select 0, %s8, %s6
  loop: start=0, step=1, limit=4
  $region2: #{se_block.1} parent=0 // loop_pre_header
    _
  $region3: #{se_block.1} parent=0 // loop_header
    %s11 = sphi 0, %s15
    %p12 = scmp.ge.s32.totalorder %s11, 4
    %s21 = sphi 0, %s23
    %s24 = sphi 0, %s21
    %s25 = sphi 0, %s24
    %s41 = sphi 0, %s25
    %s45 = sphi 0, %s45
    %s47 = sphi 0, %s45
    %s48 = sphi 0, %s47
    %s62 = sphi 0, %s48
    %s66 = sphi 0, %s66
    %s68 = sphi 0, %s66
    %s69 = sphi 0, %s68
    %s83 = sphi 0, %s69
    %s87 = sphi 0, %s87
    %s89 = sphi 0, %s87
    %s90 = sphi 0, %s89
    %s104 = sphi 0, %s90
    %s108 = sphi 0, %s108
    %s110 = sphi 0, %s108
    %s111 = sphi 0, %s110
    %s125 = sphi 0, %s111
    %s131 = sphi 0, %s133
    %s134 = sphi 0, %s131
    %s135 = sphi 0, %s134
    %s151 = sphi 0, %s135
  $region4: #{se_block.1} parent=0 // loop_header_branch
    %14 = sbr.rel (%p12) target = $region8
  $region5: #{se_block.1} parent=0 // loop_body
    %s16 = ssub.s32 %s11, 1
    %s17 = ssub.s32 %s11, 2
    %s18 = sadd.s32 %s11, 1
    %s19 = ssub.s32 %s11, %s18
    %p20 = scmp.eq.s32.totalorder %s19, 0
    %s22 = sadd.s32 %s21, 1
    %s23 = scalar_select %p20, %s21, %s22
    %p26 = pneg %p20
    %p27 = scmp.eq.s32.totalorder %s11, 1
    %p28 = por %p26, %p27
    %p29 = scmp.ne.s32.totalorder %s21, %s24
    %p30 = scmp.eq.s32.totalorder %s11, 0
    %p31 = por %p29, %p30
    %p32 = scmp.ne.s32.totalorder %s21, %s24
    %p33 = scmp.eq.s32.totalorder %s16, 1
    %p34 = por %p32, %p33
    %p35 = scmp.ne.s32.totalorder %s24, %s25
    %p36 = scmp.eq.s32.totalorder %s16, 0
    %p37 = por %p35, %p36
    %p38 = scmp.ne.s32.totalorder %s24, %s25
    %p39 = scmp.eq.s32.totalorder %s17, 1
    %p40 = por %p38, %p39
    %p42 = scmp.ne.s32.totalorder %s25, %s41
    %p43 = scmp.eq.s32.totalorder %s17, 0
    %p44 = por %p42, %p43
    %s46 = sadd.s32 %s45, 1
    %p49 = scmp.eq.s32.totalorder %s11, 1
    %p50 = scmp.ne.s32.totalorder %s45, %s47
    %p51 = scmp.eq.s32.totalorder %s11, 0
    %p52 = por %p50, %p51
    %p53 = scmp.ne.s32.totalorder %s45, %s47
    %p54 = scmp.eq.s32.totalorder %s16, 1
    %p55 = por %p53, %p54
    %p56 = scmp.ne.s32.totalorder %s47, %s48
    %p57 = scmp.eq.s32.totalorder %s16, 0
    %p58 = por %p56, %p57
    %p59 = scmp.ne.s32.totalorder %s47, %s48
    %p60 = scmp.eq.s32.totalorder %s17, 1
    %p61 = por %p59, %p60
    %p63 = scmp.ne.s32.totalorder %s48, %s62
    %p64 = scmp.eq.s32.totalorder %s17, 0
    %p65 = por %p63, %p64
    %s67 = sadd.s32 %s66, 1
    %p70 = scmp.eq.s32.totalorder %s11, 1
    %p71 = scmp.ne.s32.totalorder %s66, %s68
    %p72 = scmp.eq.s32.totalorder %s11, 0
    %p73 = por %p71, %p72
    %p74 = scmp.ne.s32.totalorder %s66, %s68
    %p75 = scmp.eq.s32.totalorder %s16, 1
    %p76 = por %p74, %p75
    %p77 = scmp.ne.s32.totalorder %s68, %s69
    %p78 = scmp.eq.s32.totalorder %s16, 0
    %p79 = por %p77, %p78
    %p80 = scmp.ne.s32.totalorder %s68, %s69
    %p81 = scmp.eq.s32.totalorder %s17, 1
    %p82 = por %p80, %p81
    %p84 = scmp.ne.s32.totalorder %s69, %s83
    %p85 = scmp.eq.s32.totalorder %s17, 0
    %p86 = por %p84, %p85
    %s88 = sadd.s32 %s87, 1
    %p91 = scmp.eq.s32.totalorder %s11, 1
    %p92 = scmp.ne.s32.totalorder %s87, %s89
    %p93 = scmp.eq.s32.totalorder %s11, 0
    %p94 = por %p92, %p93
    %p95 = scmp.ne.s32.totalorder %s87, %s89
    %p96 = scmp.eq.s32.totalorder %s16, 1
    %p97 = por %p95, %p96
    %p98 = scmp.ne.s32.totalorder %s89, %s90
    %p99 = scmp.eq.s32.totalorder %s16, 0
    %p100 = por %p98, %p99
    %p101 = scmp.ne.s32.totalorder %s89, %s90
    %p102 = scmp.eq.s32.totalorder %s17, 1
    %p103 = por %p101, %p102
    %p105 = scmp.ne.s32.totalorder %s90, %s104
    %p106 = scmp.eq.s32.totalorder %s17, 0
    %p107 = por %p105, %p106
    %s109 = sadd.s32 %s108, 1
    %p112 = scmp.eq.s32.totalorder %s11, 1
    %p113 = scmp.ne.s32.totalorder %s108, %s110
    %p114 = scmp.eq.s32.totalorder %s11, 0
    %p115 = por %p113, %p114
    %p116 = scmp.ne.s32.totalorder %s108, %s110
    %p117 = scmp.eq.s32.totalorder %s16, 1
    %p118 = por %p116, %p117
    %p119 = scmp.ne.s32.totalorder %s110, %s111
    %p120 = scmp.eq.s32.totalorder %s16, 0
    %p121 = por %p119, %p120
    %p122 = scmp.ne.s32.totalorder %s110, %s111
    %p123 = scmp.eq.s32.totalorder %s17, 1
    %p124 = por %p122, %p123
    %p126 = scmp.ne.s32.totalorder %s111, %s125
    %p127 = scmp.eq.s32.totalorder %s17, 0
    %p128 = por %p126, %p127
    %s129 = ssub.s32 %s11, %s18
    %p130 = scmp.eq.s32.totalorder %s129, 0
    %s132 = sadd.s32 %s131, 1
    %s133 = scalar_select %p130, %s131, %s132
    %p136 = pneg %p130
    %p137 = scmp.eq.s32.totalorder %s11, 1
    %p138 = por %p136, %p137
    %p139 = scmp.ne.s32.totalorder %s131, %s134
    %p140 = scmp.eq.s32.totalorder %s11, 0
    %p141 = por %p139, %p140
    %p142 = scmp.ne.s32.totalorder %s131, %s134
    %p143 = scmp.eq.s32.totalorder %s16, 1
    %p144 = por %p142, %p143
    %p145 = scmp.ne.s32.totalorder %s134, %s135
    %p146 = scmp.eq.s32.totalorder %s16, 0
    %p147 = por %p145, %p146
    %p148 = scmp.ne.s32.totalorder %s134, %s135
    %p149 = scmp.eq.s32.totalorder %s17, 1
    %p150 = por %p148, %p149
    %p152 = scmp.ne.s32.totalorder %s135, %s151
    %p153 = scmp.eq.s32.totalorder %s17, 0
    %p154 = por %p152, %p153
    %p155 = scmp.le.s32.totalorder 1, %s11
    %p156 = scmp.lt.s32.totalorder %s11, 3
    %p157 = pnand %p155, %p156
    %p158 = pneg %p157
    // Predicated region
    $region9: #{se_block.1} parent=5 // pred_check
      _
    $region10: #{se_block.1} parent=5 // pred_check_branch
      %160 = sbr.rel (%p157) target = $region12
    $region11: #{se_block.1} parent=5 // pred_region
      %s161 = ssub.s32 %s11, 1
      // Predicated region
      $region13: #{se_block.1} parent=11 // pred_check
        %p162 = pneg %p58
      $region14: #{se_block.1} parent=11 // pred_check_branch
        %164 = sbr.rel (%p162) target = $region16
      $region15: #{se_block.1} parent=11 // pred_region
        _
      $region16: #{se_block.1} parent=11 // pred_fallthru
        _
      // Predicated region
      $region17: #{se_block.1} parent=11 // pred_check
        %p165 = pneg %p79
      $region18: #{se_block.1} parent=11 // pred_check_branch
        %167 = sbr.rel (%p165) target = $region20
      $region19: #{se_block.1} parent=11 // pred_region
        _
      $region20: #{se_block.1} parent=11 // pred_fallthru
        _
      // Predicated region
      $region21: #{se_block.1} parent=11 // pred_check
        %p168 = pneg %p100
      $region22: #{se_block.1} parent=11 // pred_check_branch
        %170 = sbr.rel (%p168) target = $region24
      $region23: #{se_block.1} parent=11 // pred_region
        _
      $region24: #{se_block.1} parent=11 // pred_fallthru
        _
      // Predicated region
      $region25: #{se_block.1} parent=11 // pred_check
        %p171 = pneg %p121
      $region26: #{se_block.1} parent=11 // pred_check_branch
        %173 = sbr.rel (%p171) target = $region28
      $region27: #{se_block.1} parent=11 // pred_region
        _
      $region28: #{se_block.1} parent=11 // pred_fallthru
        _
    $region12: #{se_block.1} parent=5 // pred_fallthru
      _
    %p174 = scmp.lt.s32.totalorder %s11, 2
    // Predicated region
    $region29: #{se_block.1} parent=5 // pred_check
      %p175 = pneg %p174
    $region30: #{se_block.1} parent=5 // pred_check_branch
      %177 = sbr.rel (%p175) target = $region32
    $region31: #{se_block.1} parent=5 // pred_region
      // Predicated region
      $region33: #{se_block.1} parent=31 // pred_check
        %p178 = pneg %p31
      $region34: #{se_block.1} parent=31 // pred_check_branch
        %180 = sbr.rel (%p178) target = $region36
      $region35: #{se_block.1} parent=31 // pred_region
        %p181 = scmp.lt.s32.totalorder %s11, 1
        %s182 = scalar_select %p181, %s11, 1
        %s183 = smul.addr %s182, 128
        %s184 = smul.addr %s183, 8
        %s185 = scalar_lea.vmem %s0, %s184
      $region36: #{se_block.1} parent=31 // pred_fallthru
        _
    $region32: #{se_block.1} parent=5 // pred_fallthru
      _
    %p186 = scmp.le.s32.totalorder 1, %s11
    %p187 = scmp.lt.s32.totalorder %s11, 3
    %p188 = pnand %p186, %p187
    %p189 = pneg %p188
    // Predicated region
    $region37: #{se_block.1} parent=5 // pred_check
      _
    $region38: #{se_block.1} parent=5 // pred_check_branch
      %191 = sbr.rel (%p188) target = $region40
    $region39: #{se_block.1} parent=5 // pred_region
      %s192 = ssub.s32 %s11, 1
      %p193 = scmp.lt.s32.totalorder %s16, 1
      %s194 = scalar_select %p193, %s16, 1
      %s195 = smul.addr %s194, 128
      %s196 = smul.addr %s195, 8
      %s197 = scalar_lea.vmem %s0, %s196
      %p198 = pneg %p37
      %p199 = pneg %p34
      %p200 = pneg %p58
      %p201 = pneg %p55
      %p202 = pneg %p79
      %p203 = pneg %p76
      %p204 = pneg %p100
      %p205 = pneg %p97
      %p206 = pneg %p121
      %p207 = pneg %p118
      %p208 = pneg %p147
      %p209 = pneg %p144
      %p210 = scmp.lt.s32.totalorder %s16, 1
      %s211 = scalar_select %p210, %s16, 1
      %s212 = smul.addr %s211, 128
      %s213 = smul.addr %s212, 8
      %s214 = scalar_lea.vmem %s5, %s213
      %p215 = scmp.lt.s32.totalorder %s16, 1
      %s216 = scalar_select %p215, %s16, 1
      %s217 = smul.addr %s216, 128
      %s218 = smul.addr %s217, 8
      %s219 = scalar_lea.vmem %s0, %s218
      %p220 = scmp.lt.s32.totalorder %s16, 1
      %s221 = scalar_select %p220, %s16, 1
      %s222 = smul.addr %s221, 128
      %s223 = smul.addr %s222, 8
      %s224 = scalar_lea.vmem %s5, %s223
      %v225 = vld [vmem:[%s219] sm:$0xff]
      %v226 = vld [vmem:[%s219 + $0x8] sm:$0xff]
      %v227 = vld [vmem:[%s219 + $0x10] sm:$0xff]
      %v228 = vld [vmem:[%s219 + $0x18] sm:$0xff]
      %v229 = vld [vmem:[%s219 + $0x20] sm:$0xff]
      %v230 = vld [vmem:[%s219 + $0x28] sm:$0xff]
      %v231 = vld [vmem:[%s219 + $0x30] sm:$0xff]
      %v232 = vld [vmem:[%s219 + $0x38] sm:$0xff]
      %v233 = vld [vmem:[%s219 + $0x40] sm:$0xff]
      %v234 = vld [vmem:[%s219 + $0x48] sm:$0xff]
      %v235 = vld [vmem:[%s219 + $0x50] sm:$0xff]
      %v236 = vld [vmem:[%s219 + $0x58] sm:$0xff]
      %v237 = vld [vmem:[%s219 + $0x60] sm:$0xff]
      %v238 = vld [vmem:[%s219 + $0x68] sm:$0xff]
      %v239 = vld [vmem:[%s219 + $0x70] sm:$0xff]
      %v240 = vld [vmem:[%s219 + $0x78] sm:$0xff]
      %v241 = vld [vmem:[%s219 + $0x80] sm:$0xff]
      %v242 = vld [vmem:[%s219 + $0x88] sm:$0xff]
      %v243 = vld [vmem:[%s219 + $0x90] sm:$0xff]
      %v244 = vld [vmem:[%s219 + $0x98] sm:$0xff]
      %v245 = vld [vmem:[%s219 + $0xa0] sm:$0xff]
      %v246 = vld [vmem:[%s219 + $0xa8] sm:$0xff]
      %v247 = vld [vmem:[%s219 + $0xb0] sm:$0xff]
      %v248 = vld [vmem:[%s219 + $0xb8] sm:$0xff]
      %v249 = vld [vmem:[%s219 + $0xc0] sm:$0xff]
      %v250 = vld [vmem:[%s219 + $0xc8] sm:$0xff]
      %v251 = vld [vmem:[%s219 + $0xd0] sm:$0xff]
      %v252 = vld [vmem:[%s219 + $0xd8] sm:$0xff]
      %v253 = vld [vmem:[%s219 + $0xe0] sm:$0xff]
      %v254 = vld [vmem:[%s219 + $0xe8] sm:$0xff]
      %v255 = vld [vmem:[%s219 + $0xf0] sm:$0xff]
      %v256 = vld [vmem:[%s219 + $0xf8] sm:$0xff]
      %v257 = vld [vmem:[%s219 + $0x100] sm:$0xff]
      %v258 = vld [vmem:[%s219 + $0x108] sm:$0xff]
      %v259 = vld [vmem:[%s219 + $0x110] sm:$0xff]
      %v260 = vld [vmem:[%s219 + $0x118] sm:$0xff]
      %v261 = vld [vmem:[%s219 + $0x120] sm:$0xff]
      %v262 = vld [vmem:[%s219 + $0x128] sm:$0xff]
      %v263 = vld [vmem:[%s219 + $0x130] sm:$0xff]
      %v264 = vld [vmem:[%s219 + $0x138] sm:$0xff]
      %v265 = vld [vmem:[%s219 + $0x140] sm:$0xff]
      %v266 = vld [vmem:[%s219 + $0x148] sm:$0xff]
      %v267 = vld [vmem:[%s219 + $0x150] sm:$0xff]
      %v268 = vld [vmem:[%s219 + $0x158] sm:$0xff]
      %v269 = vld [vmem:[%s219 + $0x160] sm:$0xff]
      %v270 = vld [vmem:[%s219 + $0x168] sm:$0xff]
      %v271 = vld [vmem:[%s219 + $0x170] sm:$0xff]
      %v272 = vld [vmem:[%s219 + $0x178] sm:$0xff]
      %v273 = vld [vmem:[%s219 + $0x180] sm:$0xff]
      %v274 = vld [vmem:[%s219 + $0x188] sm:$0xff]
      %v275 = vld [vmem:[%s219 + $0x190] sm:$0xff]
      %v276 = vld [vmem:[%s219 + $0x198] sm:$0xff]
      %v277 = vld [vmem:[%s219 + $0x1a0] sm:$0xff]
      %v278 = vld [vmem:[%s219 + $0x1a8] sm:$0xff]
      %v279 = vld [vmem:[%s219 + $0x1b0] sm:$0xff]
      %v280 = vld [vmem:[%s219 + $0x1b8] sm:$0xff]
      %v281 = vld [vmem:[%s219 + $0x1c0] sm:$0xff]
      %v282 = vld [vmem:[%s219 + $0x1c8] sm:$0xff]
      %v283 = vld [vmem:[%s219 + $0x1d0] sm:$0xff]
      %v284 = vld [vmem:[%s219 + $0x1d8] sm:$0xff]
      %v285 = vld [vmem:[%s219 + $0x1e0] sm:$0xff]
      %v286 = vld [vmem:[%s219 + $0x1e8] sm:$0xff]
      %v287 = vld [vmem:[%s219 + $0x1f0] sm:$0xff]
      %v288 = vld [vmem:[%s219 + $0x1f8] sm:$0xff]
      %v289 = vld [vmem:[%s219 + $0x200] sm:$0xff]
      %v290 = vld [vmem:[%s219 + $0x208] sm:$0xff]
      %v291 = vld [vmem:[%s219 + $0x210] sm:$0xff]
      %v292 = vld [vmem:[%s219 + $0x218] sm:$0xff]
      %v293 = vld [vmem:[%s219 + $0x220] sm:$0xff]
      %v294 = vld [vmem:[%s219 + $0x228] sm:$0xff]
      %v295 = vld [vmem:[%s219 + $0x230] sm:$0xff]
      %v296 = vld [vmem:[%s219 + $0x238] sm:$0xff]
      %v297 = vld [vmem:[%s219 + $0x240] sm:$0xff]
      %v298 = vld [vmem:[%s219 + $0x248] sm:$0xff]
      %v299 = vld [vmem:[%s219 + $0x250] sm:$0xff]
      %v300 = vld [vmem:[%s219 + $0x258] sm:$0xff]
      %v301 = vld [vmem:[%s219 + $0x260] sm:$0xff]
      %v302 = vld [vmem:[%s219 + $0x268] sm:$0xff]
      %v303 = vld [vmem:[%s219 + $0x270] sm:$0xff]
      %v304 = vld [vmem:[%s219 + $0x278] sm:$0xff]
      %v305 = vld [vmem:[%s219 + $0x280] sm:$0xff]
      %v306 = vld [vmem:[%s219 + $0x288] sm:$0xff]
      %v307 = vld [vmem:[%s219 + $0x290] sm:$0xff]
      %v308 = vld [vmem:[%s219 + $0x298] sm:$0xff]
      %v309 = vld [vmem:[%s219 + $0x2a0] sm:$0xff]
      %v310 = vld [vmem:[%s219 + $0x2a8] sm:$0xff]
      %v311 = vld [vmem:[%s219 + $0x2b0] sm:$0xff]
      %v312 = vld [vmem:[%s219 + $0x2b8] sm:$0xff]
      %v313 = vld [vmem:[%s219 + $0x2c0] sm:$0xff]
      %v314 = vld [vmem:[%s219 + $0x2c8] sm:$0xff]
      %v315 = vld [vmem:[%s219 + $0x2d0] sm:$0xff]
      %v316 = vld [vmem:[%s219 + $0x2d8] sm:$0xff]
      %v317 = vld [vmem:[%s219 + $0x2e0] sm:$0xff]
      %v318 = vld [vmem:[%s219 + $0x2e8] sm:$0xff]
      %v319 = vld [vmem:[%s219 + $0x2f0] sm:$0xff]
      %v320 = vld [vmem:[%s219 + $0x2f8] sm:$0xff]
      %v321 = vld [vmem:[%s219 + $0x300] sm:$0xff]
      %v322 = vld [vmem:[%s219 + $0x308] sm:$0xff]
      %v323 = vld [vmem:[%s219 + $0x310] sm:$0xff]
      %v324 = vld [vmem:[%s219 + $0x318] sm:$0xff]
      %v325 = vld [vmem:[%s219 + $0x320] sm:$0xff]
      %v326 = vld [vmem:[%s219 + $0x328] sm:$0xff]
      %v327 = vld [vmem:[%s219 + $0x330] sm:$0xff]
      %v328 = vld [vmem:[%s219 + $0x338] sm:$0xff]
      %v329 = vld [vmem:[%s219 + $0x340] sm:$0xff]
      %v330 = vld [vmem:[%s219 + $0x348] sm:$0xff]
      %v331 = vld [vmem:[%s219 + $0x350] sm:$0xff]
      %v332 = vld [vmem:[%s219 + $0x358] sm:$0xff]
      %v333 = vld [vmem:[%s219 + $0x360] sm:$0xff]
      %v334 = vld [vmem:[%s219 + $0x368] sm:$0xff]
      %v335 = vld [vmem:[%s219 + $0x370] sm:$0xff]
      %v336 = vld [vmem:[%s219 + $0x378] sm:$0xff]
      %v337 = vld [vmem:[%s219 + $0x380] sm:$0xff]
      %v338 = vld [vmem:[%s219 + $0x388] sm:$0xff]
      %v339 = vld [vmem:[%s219 + $0x390] sm:$0xff]
      %v340 = vld [vmem:[%s219 + $0x398] sm:$0xff]
      %v341 = vld [vmem:[%s219 + $0x3a0] sm:$0xff]
      %v342 = vld [vmem:[%s219 + $0x3a8] sm:$0xff]
      %v343 = vld [vmem:[%s219 + $0x3b0] sm:$0xff]
      %v344 = vld [vmem:[%s219 + $0x3b8] sm:$0xff]
      %v345 = vld [vmem:[%s219 + $0x3c0] sm:$0xff]
      %v346 = vld [vmem:[%s219 + $0x3c8] sm:$0xff]
      %v347 = vld [vmem:[%s219 + $0x3d0] sm:$0xff]
      %v348 = vld [vmem:[%s219 + $0x3d8] sm:$0xff]
      %v349 = vld [vmem:[%s219 + $0x3e0] sm:$0xff]
      %v350 = vld [vmem:[%s219 + $0x3e8] sm:$0xff]
      %v351 = vld [vmem:[%s219 + $0x3f0] sm:$0xff]
      %v352 = vld [vmem:[%s219 + $0x3f8] sm:$0xff]
      %v353 = vadd.f32 %v225, %v226
      %v354 = vadd.f32 %v353, %v227
      %v355 = vadd.f32 %v354, %v228
      %v356 = vadd.f32 %v355, %v229
      %v357 = vadd.f32 %v356, %v230
      %v358 = vadd.f32 %v357, %v231
      %v359 = vadd.f32 %v358, %v232
      %360 = vadd.xlane.f32.xlu0 %v359
      %v361 = vpop.xlane.xlu0 %360
      %v362 = vadd.f32 %v233, %v234
      %v363 = vadd.f32 %v362, %v235
      %v364 = vadd.f32 %v363, %v236
      %v365 = vadd.f32 %v364, %v237
      %v366 = vadd.f32 %v365, %v238
      %v367 = vadd.f32 %v366, %v239
      %v368 = vadd.f32 %v367, %v240
      %369 = vadd.xlane.f32.xlu0 %v368
      %v370 = vpop.xlane.xlu0 %369
      %v371 = vadd.f32 %v241, %v242
      %v372 = vadd.f32 %v371, %v243
      %v373 = vadd.f32 %v372, %v244
      %v374 = vadd.f32 %v373, %v245
      %v375 = vadd.f32 %v374, %v246
      %v376 = vadd.f32 %v375, %v247
      %v377 = vadd.f32 %v376, %v248
      %378 = vadd.xlane.f32.xlu0 %v377
      %v379 = vpop.xlane.xlu0 %378
      %v380 = vadd.f32 %v249, %v250
      %v381 = vadd.f32 %v380, %v251
      %v382 = vadd.f32 %v381, %v252
      %v383 = vadd.f32 %v382, %v253
      %v384 = vadd.f32 %v383, %v254
      %v385 = vadd.f32 %v384, %v255
      %v386 = vadd.f32 %v385, %v256
      %387 = vadd.xlane.f32.xlu0 %v386
      %v388 = vpop.xlane.xlu0 %387
      %v389 = vadd.f32 %v257, %v258
      %v390 = vadd.f32 %v389, %v259
      %v391 = vadd.f32 %v390, %v260
      %v392 = vadd.f32 %v391, %v261
      %v393 = vadd.f32 %v392, %v262
      %v394 = vadd.f32 %v393, %v263
      %v395 = vadd.f32 %v394, %v264
      %396 = vadd.xlane.f32.xlu0 %v395
      %v397 = vpop.xlane.xlu0 %396
      %v398 = vadd.f32 %v265, %v266
      %v399 = vadd.f32 %v398, %v267
      %v400 = vadd.f32 %v399, %v268
      %v401 = vadd.f32 %v400, %v269
      %v402 = vadd.f32 %v401, %v270
      %v403 = vadd.f32 %v402, %v271
      %v404 = vadd.f32 %v403, %v272
      %405 = vadd.xlane.f32.xlu0 %v404
      %v406 = vpop.xlane.xlu0 %405
      %v407 = vadd.f32 %v273, %v274
      %v408 = vadd.f32 %v407, %v275
      %v409 = vadd.f32 %v408, %v276
      %v410 = vadd.f32 %v409, %v277
      %v411 = vadd.f32 %v410, %v278
      %v412 = vadd.f32 %v411, %v279
      %v413 = vadd.f32 %v412, %v280
      %414 = vadd.xlane.f32.xlu0 %v413
      %v415 = vpop.xlane.xlu0 %414
      %v416 = vadd.f32 %v281, %v282
      %v417 = vadd.f32 %v416, %v283
      %v418 = vadd.f32 %v417, %v284
      %v419 = vadd.f32 %v418, %v285
      %v420 = vadd.f32 %v419, %v286
      %v421 = vadd.f32 %v420, %v287
      %v422 = vadd.f32 %v421, %v288
      %423 = vadd.xlane.f32.xlu0 %v422
      %v424 = vpop.xlane.xlu0 %423
      %v425 = vadd.f32 %v289, %v290
      %v426 = vadd.f32 %v425, %v291
      %v427 = vadd.f32 %v426, %v292
      %v428 = vadd.f32 %v427, %v293
      %v429 = vadd.f32 %v428, %v294
      %v430 = vadd.f32 %v429, %v295
      %v431 = vadd.f32 %v430, %v296
      %432 = vadd.xlane.f32.xlu0 %v431
      %v433 = vpop.xlane.xlu0 %432
      %v434 = vadd.f32 %v297, %v298
      %v435 = vadd.f32 %v434, %v299
      %v436 = vadd.f32 %v435, %v300
      %v437 = vadd.f32 %v436, %v301
      %v438 = vadd.f32 %v437, %v302
      %v439 = vadd.f32 %v438, %v303
      %v440 = vadd.f32 %v439, %v304
      %441 = vadd.xlane.f32.xlu0 %v440
      %v442 = vpop.xlane.xlu0 %441
      %v443 = vadd.f32 %v305, %v306
      %v444 = vadd.f32 %v443, %v307
      %v445 = vadd.f32 %v444, %v308
      %v446 = vadd.f32 %v445, %v309
      %v447 = vadd.f32 %v446, %v310
      %v448 = vadd.f32 %v447, %v311
      %v449 = vadd.f32 %v448, %v312
      %450 = vadd.xlane.f32.xlu0 %v449
      %v451 = vpop.xlane.xlu0 %450
      %v452 = vadd.f32 %v313, %v314
      %v453 = vadd.f32 %v452, %v315
      %v454 = vadd.f32 %v453, %v316
      %v455 = vadd.f32 %v454, %v317
      %v456 = vadd.f32 %v455, %v318
      %v457 = vadd.f32 %v456, %v319
      %v458 = vadd.f32 %v457, %v320
      %459 = vadd.xlane.f32.xlu0 %v458
      %v460 = vpop.xlane.xlu0 %459
      %v461 = vadd.f32 %v321, %v322
      %v462 = vadd.f32 %v461, %v323
      %v463 = vadd.f32 %v462, %v324
      %v464 = vadd.f32 %v463, %v325
      %v465 = vadd.f32 %v464, %v326
      %v466 = vadd.f32 %v465, %v327
      %v467 = vadd.f32 %v466, %v328
      %468 = vadd.xlane.f32.xlu0 %v467
      %v469 = vpop.xlane.xlu0 %468
      %v470 = vadd.f32 %v329, %v330
      %v471 = vadd.f32 %v470, %v331
      %v472 = vadd.f32 %v471, %v332
      %v473 = vadd.f32 %v472, %v333
      %v474 = vadd.f32 %v473, %v334
      %v475 = vadd.f32 %v474, %v335
      %v476 = vadd.f32 %v475, %v336
      %477 = vadd.xlane.f32.xlu0 %v476
      %v478 = vpop.xlane.xlu0 %477
      %v479 = vadd.f32 %v337, %v338
      %v480 = vadd.f32 %v479, %v339
      %v481 = vadd.f32 %v480, %v340
      %v482 = vadd.f32 %v481, %v341
      %v483 = vadd.f32 %v482, %v342
      %v484 = vadd.f32 %v483, %v343
      %v485 = vadd.f32 %v484, %v344
      %486 = vadd.xlane.f32.xlu0 %v485
      %v487 = vpop.xlane.xlu0 %486
      %v488 = vadd.f32 %v345, %v346
      %v489 = vadd.f32 %v488, %v347
      %v490 = vadd.f32 %v489, %v348
      %v491 = vadd.f32 %v490, %v349
      %v492 = vadd.f32 %v491, %v350
      %v493 = vadd.f32 %v492, %v351
      %v494 = vadd.f32 %v493, %v352
      %495 = vadd.xlane.f32.xlu0 %v494
      %v496 = vpop.xlane.xlu0 %495
      %v497 = vmul.f32 %v361, 0.0009765625
      %v498 = vmul.f32 %v370, 0.0009765625
      %v499 = vmul.f32 %v379, 0.0009765625
      %v500 = vmul.f32 %v388, 0.0009765625
      %v501 = vmul.f32 %v397, 0.0009765625
      %v502 = vmul.f32 %v406, 0.0009765625
      %v503 = vmul.f32 %v415, 0.0009765625
      %v504 = vmul.f32 %v424, 0.0009765625
      %v505 = vmul.f32 %v433, 0.0009765625
      %v506 = vmul.f32 %v442, 0.0009765625
      %v507 = vmul.f32 %v451, 0.0009765625
      %v508 = vmul.f32 %v460, 0.0009765625
      %v509 = vmul.f32 %v469, 0.0009765625
      %v510 = vmul.f32 %v478, 0.0009765625
      %v511 = vmul.f32 %v487, 0.0009765625
      %v512 = vmul.f32 %v496, 0.0009765625
      %v513 = vld [vmem:[%s1] sm:$0xff]
      %v514 = vld [vmem:[%s2] sm:$0xff]
      %515 = vmatprep.subr.mxu0 0.0
      %516 = vmatpush1.msra.mxu0 %v497
      %517 = vmatprep.subr.mxu0 0.0
      %518 = vmatpush1.msra.mxu0 %v498
      %519 = vmatprep.subr.mxu0 0.0
      %520 = vmatpush1.msra.mxu0 %v499
      %521 = vmatprep.subr.mxu0 0.0
      %522 = vmatpush1.msra.mxu0 %v500
      %523 = vmatprep.subr.mxu0 0.0
      %524 = vmatpush1.msra.mxu0 %v501
      %525 = vmatprep.subr.mxu0 0.0
      %526 = vmatpush1.msra.mxu0 %v502
      %527 = vmatprep.subr.mxu0 0.0
      %528 = vmatpush1.msra.mxu0 %v503
      %529 = vmatprep.subr.mxu0 0.0
      %530 = vmatpush1.msra.mxu0 %v504
      %531 = vmatprep.subr.mxu0 0.0
      %532 = vmatpush1.msra.mxu0 %v505
      %533 = vmatprep.subr.mxu0 0.0
      %534 = vmatpush1.msra.mxu0 %v506
      %535 = vmatprep.subr.mxu0 0.0
      %536 = vmatpush1.msra.mxu0 %v507
      %537 = vmatprep.subr.mxu0 0.0
      %538 = vmatpush1.msra.mxu0 %v508
      %539 = vmatprep.subr.mxu0 0.0
      %540 = vmatpush1.msra.mxu0 %v509
      %541 = vmatprep.subr.mxu0 0.0
      %542 = vmatpush1.msra.mxu0 %v510
      %543 = vmatprep.subr.mxu0 0.0
      %544 = vmatpush1.msra.mxu0 %v511
      %545 = vmatprep.subr.mxu0 0.0
      %546 = vmatpush1.msra.mxu0 %v512
      %547 = vmatprep.subr.mxu0 0.0
      %548 = vmatpush1.msra.mxu0 0.0
      %549 = vmatprep.subr.mxu0 0.0
      %550 = vmatpush1.msra.mxu0 0.0
      %551 = vmatprep.subr.mxu0 0.0
      %552 = vmatpush1.msra.mxu0 0.0
      %553 = vmatprep.subr.mxu0 0.0
      %554 = vmatpush1.msra.mxu0 0.0
      %555 = vmatprep.subr.mxu0 0.0
      %556 = vmatpush1.msra.mxu0 0.0
      %557 = vmatprep.subr.mxu0 0.0
      %558 = vmatpush1.msra.mxu0 0.0
      %559 = vmatprep.subr.mxu0 0.0
      %560 = vmatpush1.msra.mxu0 0.0
      %561 = vmatprep.subr.mxu0 0.0
      %562 = vmatpush1.msra.mxu0 0.0
      %563 = vmatprep.subr.mxu0 0.0
      %564 = vmatpush1.msra.mxu0 0.0
      %565 = vmatprep.subr.mxu0 0.0
      %566 = vmatpush1.msra.mxu0 0.0
      %567 = vmatprep.subr.mxu0 0.0
      %568 = vmatpush1.msra.mxu0 0.0
      %569 = vmatprep.subr.mxu0 0.0
      %570 = vmatpush1.msra.mxu0 0.0
      %571 = vmatprep.subr.mxu0 0.0
      %572 = vmatpush1.msra.mxu0 0.0
      %573 = vmatprep.subr.mxu0 0.0
      %574 = vmatpush1.msra.mxu0 0.0
      %575 = vmatprep.subr.mxu0 0.0
      %576 = vmatpush1.msra.mxu0 0.0
      %577 = vmatprep.subr.mxu0 0.0
      %578 = vmatpush1.msra.mxu0 0.0
      %579 = vmatprep.mubr.f32.mxu0 0.0
      %580 = vmatmul.mubr.f32.gmra.mrb[0].mxu0 %v513
      %v581 = vpop.f32.mrb[0].mxu0
      %v582 = vadd.f32 %v514, %v581
      %v583 = vpop.f32.mrb[0].mxu0
      %584 = vdwg.mxu0
      %v585 = vmax.f32 %v582, 0.0
      %v586 = vld [vmem:[%s3] sm:$0xff]
      %v587 = vld [vmem:[%s3 + $0x8] sm:$0xff]
      %v588 = vld [vmem:[%s3 + $0x10] sm:$0xff]
      %v589 = vld [vmem:[%s3 + $0x18] sm:$0xff]
      %v590 = vld [vmem:[%s3 + $0x20] sm:$0xff]
      %v591 = vld [vmem:[%s3 + $0x28] sm:$0xff]
      %v592 = vld [vmem:[%s3 + $0x30] sm:$0xff]
      %v593 = vld [vmem:[%s3 + $0x38] sm:$0xff]
      %v594 = vld [vmem:[%s3 + $0x40] sm:$0xff]
      %v595 = vld [vmem:[%s3 + $0x48] sm:$0xff]
      %v596 = vld [vmem:[%s3 + $0x50] sm:$0xff]
      %v597 = vld [vmem:[%s3 + $0x58] sm:$0xff]
      %v598 = vld [vmem:[%s3 + $0x60] sm:$0xff]
      %v599 = vld [vmem:[%s3 + $0x68] sm:$0xff]
      %v600 = vld [vmem:[%s3 + $0x70] sm:$0xff]
      %v601 = vld [vmem:[%s3 + $0x78] sm:$0xff]
      %v602 = vld [vmem:[%s4] sm:$0xff]
      %v603 = vld [vmem:[%s4 + $0x8] sm:$0xff]
      %v604 = vld [vmem:[%s4 + $0x10] sm:$0xff]
      %v605 = vld [vmem:[%s4 + $0x18] sm:$0xff]
      %v606 = vld [vmem:[%s4 + $0x20] sm:$0xff]
      %v607 = vld [vmem:[%s4 + $0x28] sm:$0xff]
      %v608 = vld [vmem:[%s4 + $0x30] sm:$0xff]
      %v609 = vld [vmem:[%s4 + $0x38] sm:$0xff]
      %v610 = vld [vmem:[%s4 + $0x40] sm:$0xff]
      %v611 = vld [vmem:[%s4 + $0x48] sm:$0xff]
      %v612 = vld [vmem:[%s4 + $0x50] sm:$0xff]
      %v613 = vld [vmem:[%s4 + $0x58] sm:$0xff]
      %v614 = vld [vmem:[%s4 + $0x60] sm:$0xff]
      %v615 = vld [vmem:[%s4 + $0x68] sm:$0xff]
      %v616 = vld [vmem:[%s4 + $0x70] sm:$0xff]
      %v617 = vld [vmem:[%s4 + $0x78] sm:$0xff]
      %vm618 = vcmask 64512
      %v620 = vsel %vm618, %v586, 0
      %v623 = vsel %vm618, %v587, 0
      %v626 = vsel %vm618, %v588, 0
      %v629 = vsel %vm618, %v589, 0
      %v632 = vsel %vm618, %v590, 0
      %v635 = vsel %vm618, %v591, 0
      %v638 = vsel %vm618, %v592, 0
      %v641 = vsel %vm618, %v593, 0
      %v644 = vsel %vm618, %v594, 0
      %v647 = vsel %vm618, %v595, 0
      %v650 = vsel %vm618, %v596, 0
      %v653 = vsel %vm618, %v597, 0
      %v656 = vsel %vm618, %v598, 0
      %v659 = vsel %vm618, %v599, 0
      %v662 = vsel %vm618, %v600, 0
      %v665 = vsel %vm618, %v601, 0
      %667 = vmatprep.subr.mxu0 0.0
      %668 = vmatpush1.msra.mxu0 %v585
      %669 = vmatprep.subr.mxu0 0.0
      %670 = vmatpush1.msra.mxu0 0.0
      %671 = vmatprep.subr.mxu0 0.0
      %672 = vmatpush1.msra.mxu0 0.0
      %673 = vmatprep.subr.mxu0 0.0
      %674 = vmatpush1.msra.mxu0 0.0
      %675 = vmatprep.subr.mxu0 0.0
      %676 = vmatpush1.msra.mxu0 0.0
      %677 = vmatprep.subr.mxu0 0.0
      %678 = vmatpush1.msra.mxu0 0.0
      %679 = vmatprep.subr.mxu0 0.0
      %680 = vmatpush1.msra.mxu0 0.0
      %681 = vmatprep.subr.mxu0 0.0
      %682 = vmatpush1.msra.mxu0 0.0
      %683 = vmatprep.subr.mxu0 0.0
      %684 = vmatpush1.msra.mxu0 0.0
      %685 = vmatprep.subr.mxu0 0.0
      %686 = vmatpush1.msra.mxu0 0.0
      %687 = vmatprep.subr.mxu0 0.0
      %688 = vmatpush1.msra.mxu0 0.0
      %689 = vmatprep.subr.mxu0 0.0
      %690 = vmatpush1.msra.mxu0 0.0
      %691 = vmatprep.subr.mxu0 0.0
      %692 = vmatpush1.msra.mxu0 0.0
      %693 = vmatprep.subr.mxu0 0.0
      %694 = vmatpush1.msra.mxu0 0.0
      %695 = vmatprep.subr.mxu0 0.0
      %696 = vmatpush1.msra.mxu0 0.0
      %697 = vmatprep.subr.mxu0 0.0
      %698 = vmatpush1.msra.mxu0 0.0
      %699 = vmatprep.subr.mxu0 0.0
      %700 = vmatpush1.msra.mxu0 0.0
      %701 = vmatprep.subr.mxu0 0.0
      %702 = vmatpush1.msra.mxu0 0.0
      %703 = vmatprep.subr.mxu0 0.0
      %704 = vmatpush1.msra.mxu0 0.0
      %705 = vmatprep.subr.mxu0 0.0
      %706 = vmatpush1.msra.mxu0 0.0
      %707 = vmatprep.subr.mxu0 0.0
      %708 = vmatpush1.msra.mxu0 0.0
      %709 = vmatprep.subr.mxu0 0.0
      %710 = vmatpush1.msra.mxu0 0.0
      %711 = vmatprep.subr.mxu0 0.0
      %712 = vmatpush1.msra.mxu0 0.0
      %713 = vmatprep.subr.mxu0 0.0
      %714 = vmatpush1.msra.mxu0 0.0
      %715 = vmatprep.subr.mxu0 0.0
      %716 = vmatpush1.msra.mxu0 0.0
      %717 = vmatprep.subr.mxu0 0.0
      %718 = vmatpush1.msra.mxu0 0.0
      %719 = vmatprep.subr.mxu0 0.0
      %720 = vmatpush1.msra.mxu0 0.0
      %721 = vmatprep.subr.mxu0 0.0
      %722 = vmatpush1.msra.mxu0 0.0
      %723 = vmatprep.subr.mxu0 0.0
      %724 = vmatpush1.msra.mxu0 0.0
      %725 = vmatprep.subr.mxu0 0.0
      %726 = vmatpush1.msra.mxu0 0.0
      %727 = vmatprep.subr.mxu0 0.0
      %728 = vmatpush1.msra.mxu0 0.0
      %729 = vmatprep.subr.mxu0 0.0
      %730 = vmatpush1.msra.mxu0 0.0
      %731 = vmatprep.mubr.f32.mxu0 0.0
      %732 = vmatmul.mubr.f32.gmra.mrb[0].mxu0 %v620
      %v733 = vpop.f32.mrb[0].mxu0
      %v734 = vadd.f32 %v602, %v733
      %v735 = vpop.f32.mrb[0].mxu0
      %736 = vmatprep.mubr.f32.mxu0 0.0
      %737 = vmatmul.mubr.f32.gmra.mrb[0].mxu0 %v623
      %v738 = vpop.f32.mrb[0].mxu0
      %v739 = vadd.f32 %v603, %v738
      %v740 = vpop.f32.mrb[0].mxu0
      %741 = vmatprep.mubr.f32.mxu0 0.0
      %742 = vmatmul.mubr.f32.gmra.mrb[0].mxu0 %v626
      %v743 = vpop.f32.mrb[0].mxu0
      %v744 = vadd.f32 %v604, %v743
      %v745 = vpop.f32.mrb[0].mxu0
      %746 = vmatprep.mubr.f32.mxu0 0.0
      %747 = vmatmul.mubr.f32.gmra.mrb[0].mxu0 %v629
      %v748 = vpop.f32.mrb[0].mxu0
      %v749 = vadd.f32 %v605, %v748
      %v750 = vpop.f32.mrb[0].mxu0
      %751 = vmatprep.mubr.f32.mxu0 0.0
      %752 = vmatmul.mubr.f32.gmra.mrb[0].mxu0 %v632
      %v753 = vpop.f32.mrb[0].mxu0
      %v754 = vadd.f32 %v606, %v753
      %v755 = vpop.f32.mrb[0].mxu0
      %756 = vmatprep.mubr.f32.mxu0 0.0
      %757 = vmatmul.mubr.f32.gmra.mrb[0].mxu0 %v635
      %v758 = vpop.f32.mrb[0].mxu0
      %v759 = vadd.f32 %v607, %v758
      %v760 = vpop.f32.mrb[0].mxu0
      %761 = vmatprep.mubr.f32.mxu0 0.0
      %762 = vmatmul.mubr.f32.gmra.mrb[0].mxu0 %v638
      %v763 = vpop.f32.mrb[0].mxu0
      %v764 = vadd.f32 %v608, %v763
      %v765 = vpop.f32.mrb[0].mxu0
      %766 = vmatprep.mubr.f32.mxu0 0.0
      %767 = vmatmul.mubr.f32.gmra.mrb[0].mxu0 %v641
      %v768 = vpop.f32.mrb[0].mxu0
      %v769 = vadd.f32 %v609, %v768
      %v770 = vpop.f32.mrb[0].mxu0
      %771 = vmatprep.mubr.f32.mxu0 0.0
      %772 = vmatmul.mubr.f32.gmra.mrb[0].mxu0 %v644
      %v773 = vpop.f32.mrb[0].mxu0
      %v774 = vadd.f32 %v610, %v773
      %v775 = vpop.f32.mrb[0].mxu0
      %776 = vmatprep.mubr.f32.mxu0 0.0
      %777 = vmatmul.mubr.f32.gmra.mrb[0].mxu0 %v647
      %v778 = vpop.f32.mrb[0].mxu0
      %v779 = vadd.f32 %v611, %v778
      %v780 = vpop.f32.mrb[0].mxu0
      %781 = vmatprep.mubr.f32.mxu0 0.0
      %782 = vmatmul.mubr.f32.gmra.mrb[0].mxu0 %v650
      %v783 = vpop.f32.mrb[0].mxu0
      %v784 = vadd.f32 %v612, %v783
      %v785 = vpop.f32.mrb[0].mxu0
      %786 = vmatprep.mubr.f32.mxu0 0.0
      %787 = vmatmul.mubr.f32.gmra.mrb[0].mxu0 %v653
      %v788 = vpop.f32.mrb[0].mxu0
      %v789 = vadd.f32 %v613, %v788
      %v790 = vpop.f32.mrb[0].mxu0
      %791 = vmatprep.mubr.f32.mxu0 0.0
      %792 = vmatmul.mubr.f32.gmra.mrb[0].mxu0 %v656
      %v793 = vpop.f32.mrb[0].mxu0
      %v794 = vadd.f32 %v614, %v793
      %v795 = vpop.f32.mrb[0].mxu0
      %796 = vmatprep.mubr.f32.mxu0 0.0
      %797 = vmatmul.mubr.f32.gmra.mrb[0].mxu0 %v659
      %v798 = vpop.f32.mrb[0].mxu0
      %v799 = vadd.f32 %v615, %v798
      %v800 = vpop.f32.mrb[0].mxu0
      %801 = vmatprep.mubr.f32.mxu0 0.0
      %802 = vmatmul.mubr.f32.gmra.mrb[0].mxu0 %v662
      %v803 = vpop.f32.mrb[0].mxu0
      %v804 = vadd.f32 %v616, %v803
      %v805 = vpop.f32.mrb[0].mxu0
      %806 = vmatprep.mubr.f32.mxu0 0.0
      %807 = vmatmul.mubr.f32.gmra.mrb[0].mxu0 %v665
      %v808 = vpop.f32.mrb[0].mxu0
      %v809 = vadd.f32 %v617, %v808
      %v810 = vpop.f32.mrb[0].mxu0
      %811 = vdwg.mxu0
      %v812 = vxor.u32 %v734, 2147483648
      %v813 = vxor.u32 %v739, 2147483648
      %v814 = vxor.u32 %v744, 2147483648
      %v815 = vxor.u32 %v749, 2147483648
      %v816 = vxor.u32 %v754, 2147483648
      %v817 = vxor.u32 %v759, 2147483648
      %v818 = vxor.u32 %v764, 2147483648
      %v819 = vxor.u32 %v769, 2147483648
      %v820 = vxor.u32 %v774, 2147483648
      %v821 = vxor.u32 %v779, 2147483648
      %v822 = vxor.u32 %v784, 2147483648
      %v823 = vxor.u32 %v789, 2147483648
      %v824 = vxor.u32 %v794, 2147483648
      %v825 = vxor.u32 %v799, 2147483648
      %v826 = vxor.u32 %v804, 2147483648
      %v827 = vxor.u32 %v809, 2147483648
      %v828 = vmul.f32 %v812, 1.442695
      %v829 = vpow.pop %v828
      %v830 = vmul.f32 %v813, 1.442695
      %v831 = vpow.pop %v830
      %v832 = vmul.f32 %v814, 1.442695
      %v833 = vpow.pop %v832
      %v834 = vmul.f32 %v815, 1.442695
      %v835 = vpow.pop %v834
      %v836 = vmul.f32 %v816, 1.442695
      %v837 = vpow.pop %v836
      %v838 = vmul.f32 %v817, 1.442695
      %v839 = vpow.pop %v838
      %v840 = vmul.f32 %v818, 1.442695
      %v841 = vpow.pop %v840
      %v842 = vmul.f32 %v819, 1.442695
      %v843 = vpow.pop %v842
      %v844 = vmul.f32 %v820, 1.442695
      %v845 = vpow.pop %v844
      %v846 = vmul.f32 %v821, 1.442695
      %v847 = vpow.pop %v846
      %v848 = vmul.f32 %v822, 1.442695
      %v849 = vpow.pop %v848
      %v850 = vmul.f32 %v823, 1.442695
      %v851 = vpow.pop %v850
      %v852 = vmul.f32 %v824, 1.442695
      %v853 = vpow.pop %v852
      %v854 = vmul.f32 %v825, 1.442695
      %v855 = vpow.pop %v854
      %v856 = vmul.f32 %v826, 1.442695
      %v857 = vpow.pop %v856
      %v858 = vmul.f32 %v827, 1.442695
      %v859 = vpow.pop %v858
      %v860 = vadd.f32 %v829, 1.0
      %v861 = vadd.f32 %v831, 1.0
      %v862 = vadd.f32 %v833, 1.0
      %v863 = vadd.f32 %v835, 1.0
      %v864 = vadd.f32 %v837, 1.0
      %v865 = vadd.f32 %v839, 1.0
      %v866 = vadd.f32 %v841, 1.0
      %v867 = vadd.f32 %v843, 1.0
      %v868 = vadd.f32 %v845, 1.0
      %v869 = vadd.f32 %v847, 1.0
      %v870 = vadd.f32 %v849, 1.0
      %v871 = vadd.f32 %v851, 1.0
      %v872 = vadd.f32 %v853, 1.0
      %v873 = vadd.f32 %v855, 1.0
      %v874 = vadd.f32 %v857, 1.0
      %v875 = vadd.f32 %v859, 1.0
      %v876 = vrcp.pop %v860
      %v877 = vmul.f32 1.0, %v876
      %v878 = vrcp.pop %v861
      %v879 = vmul.f32 1.0, %v878
      %v880 = vrcp.pop %v862
      %v881 = vmul.f32 1.0, %v880
      %v882 = vrcp.pop %v863
      %v883 = vmul.f32 1.0, %v882
      %v884 = vrcp.pop %v864
      %v885 = vmul.f32 1.0, %v884
      %v886 = vrcp.pop %v865
      %v887 = vmul.f32 1.0, %v886
      %v888 = vrcp.pop %v866
      %v889 = vmul.f32 1.0, %v888
      %v890 = vrcp.pop %v867
      %v891 = vmul.f32 1.0, %v890
      %v892 = vrcp.pop %v868
      %v893 = vmul.f32 1.0, %v892
      %v894 = vrcp.pop %v869
      %v895 = vmul.f32 1.0, %v894
      %v896 = vrcp.pop %v870
      %v897 = vmul.f32 1.0, %v896
      %v898 = vrcp.pop %v871
      %v899 = vmul.f32 1.0, %v898
      %v900 = vrcp.pop %v872
      %v901 = vmul.f32 1.0, %v900
      %v902 = vrcp.pop %v873
      %v903 = vmul.f32 1.0, %v902
      %v904 = vrcp.pop %v874
      %v905 = vmul.f32 1.0, %v904
      %v906 = vrcp.pop %v875
      %v907 = vmul.f32 1.0, %v906
      %909 = vset.pattern.permute.xlu0 0
      %910 = vperm.xlu0 %909, %v877
      %v911 = vpop.permute.xlu0 %910
      %914 = vset.pattern.permute.xlu0 0
      %915 = vperm.xlu0 %914, %v879
      %v916 = vpop.permute.xlu0 %915
      %919 = vset.pattern.permute.xlu0 0
      %920 = vperm.xlu0 %919, %v881
      %v921 = vpop.permute.xlu0 %920
      %924 = vset.pattern.permute.xlu0 0
      %925 = vperm.xlu0 %924, %v883
      %v926 = vpop.permute.xlu0 %925
      %929 = vset.pattern.permute.xlu0 0
      %930 = vperm.xlu0 %929, %v885
      %v931 = vpop.permute.xlu0 %930
      %934 = vset.pattern.permute.xlu0 0
      %935 = vperm.xlu0 %934, %v887
      %v936 = vpop.permute.xlu0 %935
      %939 = vset.pattern.permute.xlu0 0
      %940 = vperm.xlu0 %939, %v889
      %v941 = vpop.permute.xlu0 %940
      %944 = vset.pattern.permute.xlu0 0
      %945 = vperm.xlu0 %944, %v891
      %v946 = vpop.permute.xlu0 %945
      %949 = vset.pattern.permute.xlu0 0
      %950 = vperm.xlu0 %949, %v893
      %v951 = vpop.permute.xlu0 %950
      %954 = vset.pattern.permute.xlu0 0
      %955 = vperm.xlu0 %954, %v895
      %v956 = vpop.permute.xlu0 %955
      %959 = vset.pattern.permute.xlu0 0
      %960 = vperm.xlu0 %959, %v897
      %v961 = vpop.permute.xlu0 %960
      %964 = vset.pattern.permute.xlu0 0
      %965 = vperm.xlu0 %964, %v899
      %v966 = vpop.permute.xlu0 %965
      %969 = vset.pattern.permute.xlu0 0
      %970 = vperm.xlu0 %969, %v901
      %v971 = vpop.permute.xlu0 %970
      %974 = vset.pattern.permute.xlu0 0
      %975 = vperm.xlu0 %974, %v903
      %v976 = vpop.permute.xlu0 %975
      %979 = vset.pattern.permute.xlu0 0
      %980 = vperm.xlu0 %979, %v905
      %v981 = vpop.permute.xlu0 %980
      %984 = vset.pattern.permute.xlu0 0
      %985 = vperm.xlu0 %984, %v907
      %v986 = vpop.permute.xlu0 %985
      %v988 = vmul.f32 %v225, %v911
      %v989 = vmul.f32 %v226, %v911
      %v990 = vmul.f32 %v227, %v911
      %v991 = vmul.f32 %v228, %v911
      %v992 = vmul.f32 %v229, %v911
      %v993 = vmul.f32 %v230, %v911
      %v994 = vmul.f32 %v231, %v911
      %v995 = vmul.f32 %v232, %v911
      %v996 = vmul.f32 %v233, %v916
      %v997 = vmul.f32 %v234, %v916
      %v998 = vmul.f32 %v235, %v916
      %v999 = vmul.f32 %v236, %v916
      %v1000 = vmul.f32 %v237, %v916
      %v1001 = vmul.f32 %v238, %v916
      %v1002 = vmul.f32 %v239, %v916
      %v1003 = vmul.f32 %v240, %v916
      %v1004 = vmul.f32 %v241, %v921
      %v1005 = vmul.f32 %v242, %v921
      %v1006 = vmul.f32 %v243, %v921
      %v1007 = vmul.f32 %v244, %v921
      %v1008 = vmul.f32 %v245, %v921
      %v1009 = vmul.f32 %v246, %v921
      %v1010 = vmul.f32 %v247, %v921
      %v1011 = vmul.f32 %v248, %v921
      %v1012 = vmul.f32 %v249, %v926
      %v1013 = vmul.f32 %v250, %v926
      %v1014 = vmul.f32 %v251, %v926
      %v1015 = vmul.f32 %v252, %v926
      %v1016 = vmul.f32 %v253, %v926
      %v1017 = vmul.f32 %v254, %v926
      %v1018 = vmul.f32 %v255, %v926
      %v1019 = vmul.f32 %v256, %v926
      %v1020 = vmul.f32 %v257, %v931
      %v1021 = vmul.f32 %v258, %v931
      %v1022 = vmul.f32 %v259, %v931
      %v1023 = vmul.f32 %v260, %v931
      %v1024 = vmul.f32 %v261, %v931
      %v1025 = vmul.f32 %v262, %v931
      %v1026 = vmul.f32 %v263, %v931
      %v1027 = vmul.f32 %v264, %v931
      %v1028 = vmul.f32 %v265, %v936
      %v1029 = vmul.f32 %v266, %v936
      %v1030 = vmul.f32 %v267, %v936
      %v1031 = vmul.f32 %v268, %v936
      %v1032 = vmul.f32 %v269, %v936
      %v1033 = vmul.f32 %v270, %v936
      %v1034 = vmul.f32 %v271, %v936
      %v1035 = vmul.f32 %v272, %v936
      %v1036 = vmul.f32 %v273, %v941
      %v1037 = vmul.f32 %v274, %v941
      %v1038 = vmul.f32 %v275, %v941
      %v1039 = vmul.f32 %v276, %v941
      %v1040 = vmul.f32 %v277, %v941
      %v1041 = vmul.f32 %v278, %v941
      %v1042 = vmul.f32 %v279, %v941
      %v1043 = vmul.f32 %v280, %v941
      %v1044 = vmul.f32 %v281, %v946
      %v1045 = vmul.f32 %v282, %v946
      %v1046 = vmul.f32 %v283, %v946
      %v1047 = vmul.f32 %v284, %v946
      %v1048 = vmul.f32 %v285, %v946
      %v1049 = vmul.f32 %v286, %v946
      %v1050 = vmul.f32 %v287, %v946
      %v1051 = vmul.f32 %v288, %v946
      %v1052 = vmul.f32 %v289, %v951
      %v1053 = vmul.f32 %v290, %v951
      %v1054 = vmul.f32 %v291, %v951
      %v1055 = vmul.f32 %v292, %v951
      %v1056 = vmul.f32 %v293, %v951
      %v1057 = vmul.f32 %v294, %v951
      %v1058 = vmul.f32 %v295, %v951
      %v1059 = vmul.f32 %v296, %v951
      %v1060 = vmul.f32 %v297, %v956
      %v1061 = vmul.f32 %v298, %v956
      %v1062 = vmul.f32 %v299, %v956
      %v1063 = vmul.f32 %v300, %v956
      %v1064 = vmul.f32 %v301, %v956
      %v1065 = vmul.f32 %v302, %v956
      %v1066 = vmul.f32 %v303, %v956
      %v1067 = vmul.f32 %v304, %v956
      %v1068 = vmul.f32 %v305, %v961
      %v1069 = vmul.f32 %v306, %v961
      %v1070 = vmul.f32 %v307, %v961
      %v1071 = vmul.f32 %v308, %v961
      %v1072 = vmul.f32 %v309, %v961
      %v1073 = vmul.f32 %v310, %v961
      %v1074 = vmul.f32 %v311, %v961
      %v1075 = vmul.f32 %v312, %v961
      %v1076 = vmul.f32 %v313, %v966
      %v1077 = vmul.f32 %v314, %v966
      %v1078 = vmul.f32 %v315, %v966
      %v1079 = vmul.f32 %v316, %v966
      %v1080 = vmul.f32 %v317, %v966
      %v1081 = vmul.f32 %v318, %v966
      %v1082 = vmul.f32 %v319, %v966
      %v1083 = vmul.f32 %v320, %v966
      %v1084 = vmul.f32 %v321, %v971
      %v1085 = vmul.f32 %v322, %v971
      %v1086 = vmul.f32 %v323, %v971
      %v1087 = vmul.f32 %v324, %v971
      %v1088 = vmul.f32 %v325, %v971
      %v1089 = vmul.f32 %v326, %v971
      %v1090 = vmul.f32 %v327, %v971
      %v1091 = vmul.f32 %v328, %v971
      %v1092 = vmul.f32 %v329, %v976
      %v1093 = vmul.f32 %v330, %v976
      %v1094 = vmul.f32 %v331, %v976
      %v1095 = vmul.f32 %v332, %v976
      %v1096 = vmul.f32 %v333, %v976
      %v1097 = vmul.f32 %v334, %v976
      %v1098 = vmul.f32 %v335, %v976
      %v1099 = vmul.f32 %v336, %v976
      %v1100 = vmul.f32 %v337, %v981
      %v1101 = vmul.f32 %v338, %v981
      %v1102 = vmul.f32 %v339, %v981
      %v1103 = vmul.f32 %v340, %v981
      %v1104 = vmul.f32 %v341, %v981
      %v1105 = vmul.f32 %v342, %v981
      %v1106 = vmul.f32 %v343, %v981
      %v1107 = vmul.f32 %v344, %v981
      %v1108 = vmul.f32 %v345, %v986
      %v1109 = vmul.f32 %v346, %v986
      %v1110 = vmul.f32 %v347, %v986
      %v1111 = vmul.f32 %v348, %v986
      %v1112 = vmul.f32 %v349, %v986
      %v1113 = vmul.f32 %v350, %v986
      %v1114 = vmul.f32 %v351, %v986
      %v1115 = vmul.f32 %v352, %v986
      %1116 = vst [vmem:[%s224] sm:$0xff] %v988
      %1117 = vst [vmem:[%s224 + $0x8] sm:$0xff] %v989
      %1118 = vst [vmem:[%s224 + $0x10] sm:$0xff] %v990
      %1119 = vst [vmem:[%s224 + $0x18] sm:$0xff] %v991
      %1120 = vst [vmem:[%s224 + $0x20] sm:$0xff] %v992
      %1121 = vst [vmem:[%s224 + $0x28] sm:$0xff] %v993
      %1122 = vst [vmem:[%s224 + $0x30] sm:$0xff] %v994
      %1123 = vst [vmem:[%s224 + $0x38] sm:$0xff] %v995
      %1124 = vst [vmem:[%s224 + $0x40] sm:$0xff] %v996
      %1125 = vst [vmem:[%s224 + $0x48] sm:$0xff] %v997
      %1126 = vst [vmem:[%s224 + $0x50] sm:$0xff] %v998
      %1127 = vst [vmem:[%s224 + $0x58] sm:$0xff] %v999
      %1128 = vst [vmem:[%s224 + $0x60] sm:$0xff] %v1000
      %1129 = vst [vmem:[%s224 + $0x68] sm:$0xff] %v1001
      %1130 = vst [vmem:[%s224 + $0x70] sm:$0xff] %v1002
      %1131 = vst [vmem:[%s224 + $0x78] sm:$0xff] %v1003
      %1132 = vst [vmem:[%s224 + $0x80] sm:$0xff] %v1004
      %1133 = vst [vmem:[%s224 + $0x88] sm:$0xff] %v1005
      %1134 = vst [vmem:[%s224 + $0x90] sm:$0xff] %v1006
      %1135 = vst [vmem:[%s224 + $0x98] sm:$0xff] %v1007
      %1136 = vst [vmem:[%s224 + $0xa0] sm:$0xff] %v1008
      %1137 = vst [vmem:[%s224 + $0xa8] sm:$0xff] %v1009
      %1138 = vst [vmem:[%s224 + $0xb0] sm:$0xff] %v1010
      %1139 = vst [vmem:[%s224 + $0xb8] sm:$0xff] %v1011
      %1140 = vst [vmem:[%s224 + $0xc0] sm:$0xff] %v1012
      %1141 = vst [vmem:[%s224 + $0xc8] sm:$0xff] %v1013
      %1142 = vst [vmem:[%s224 + $0xd0] sm:$0xff] %v1014
      %1143 = vst [vmem:[%s224 + $0xd8] sm:$0xff] %v1015
      %1144 = vst [vmem:[%s224 + $0xe0] sm:$0xff] %v1016
      %1145 = vst [vmem:[%s224 + $0xe8] sm:$0xff] %v1017
      %1146 = vst [vmem:[%s224 + $0xf0] sm:$0xff] %v1018
      %1147 = vst [vmem:[%s224 + $0xf8] sm:$0xff] %v1019
      %1148 = vst [vmem:[%s224 + $0x100] sm:$0xff] %v1020
      %1149 = vst [vmem:[%s224 + $0x108] sm:$0xff] %v1021
      %1150 = vst [vmem:[%s224 + $0x110] sm:$0xff] %v1022
      %1151 = vst [vmem:[%s224 + $0x118] sm:$0xff] %v1023
      %1152 = vst [vmem:[%s224 + $0x120] sm:$0xff] %v1024
      %1153 = vst [vmem:[%s224 + $0x128] sm:$0xff] %v1025
      %1154 = vst [vmem:[%s224 + $0x130] sm:$0xff] %v1026
      %1155 = vst [vmem:[%s224 + $0x138] sm:$0xff] %v1027
      %1156 = vst [vmem:[%s224 + $0x140] sm:$0xff] %v1028
      %1157 = vst [vmem:[%s224 + $0x148] sm:$0xff] %v1029
      %1158 = vst [vmem:[%s224 + $0x150] sm:$0xff] %v1030
      %1159 = vst [vmem:[%s224 + $0x158] sm:$0xff] %v1031
      %1160 = vst [vmem:[%s224 + $0x160] sm:$0xff] %v1032
      %1161 = vst [vmem:[%s224 + $0x168] sm:$0xff] %v1033
      %1162 = vst [vmem:[%s224 + $0x170] sm:$0xff] %v1034
      %1163 = vst [vmem:[%s224 + $0x178] sm:$0xff] %v1035
      %1164 = vst [vmem:[%s224 + $0x180] sm:$0xff] %v1036
      %1165 = vst [vmem:[%s224 + $0x188] sm:$0xff] %v1037
      %1166 = vst [vmem:[%s224 + $0x190] sm:$0xff] %v1038
      %1167 = vst [vmem:[%s224 + $0x198] sm:$0xff] %v1039
      %1168 = vst [vmem:[%s224 + $0x1a0] sm:$0xff] %v1040
      %1169 = vst [vmem:[%s224 + $0x1a8] sm:$0xff] %v1041
      %1170 = vst [vmem:[%s224 + $0x1b0] sm:$0xff] %v1042
      %1171 = vst [vmem:[%s224 + $0x1b8] sm:$0xff] %v1043
      %1172 = vst [vmem:[%s224 + $0x1c0] sm:$0xff] %v1044
      %1173 = vst [vmem:[%s224 + $0x1c8] sm:$0xff] %v1045
      %1174 = vst [vmem:[%s224 + $0x1d0] sm:$0xff] %v1046
      %1175 = vst [vmem:[%s224 + $0x1d8] sm:$0xff] %v1047
      %1176 = vst [vmem:[%s224 + $0x1e0] sm:$0xff] %v1048
      %1177 = vst [vmem:[%s224 + $0x1e8] sm:$0xff] %v1049
      %1178 = vst [vmem:[%s224 + $0x1f0] sm:$0xff] %v1050
      %1179 = vst [vmem:[%s224 + $0x1f8] sm:$0xff] %v1051
      %1180 = vst [vmem:[%s224 + $0x200] sm:$0xff] %v1052
      %1181 = vst [vmem:[%s224 + $0x208] sm:$0xff] %v1053
      %1182 = vst [vmem:[%s224 + $0x210] sm:$0xff] %v1054
      %1183 = vst [vmem:[%s224 + $0x218] sm:$0xff] %v1055
      %1184 = vst [vmem:[%s224 + $0x220] sm:$0xff] %v1056
      %1185 = vst [vmem:[%s224 + $0x228] sm:$0xff] %v1057
      %1186 = vst [vmem:[%s224 + $0x230] sm:$0xff] %v1058
      %1187 = vst [vmem:[%s224 + $0x238] sm:$0xff] %v1059
      %1188 = vst [vmem:[%s224 + $0x240] sm:$0xff] %v1060
      %1189 = vst [vmem:[%s224 + $0x248] sm:$0xff] %v1061
      %1190 = vst [vmem:[%s224 + $0x250] sm:$0xff] %v1062
      %1191 = vst [vmem:[%s224 + $0x258] sm:$0xff] %v1063
      %1192 = vst [vmem:[%s224 + $0x260] sm:$0xff] %v1064
      %1193 = vst [vmem:[%s224 + $0x268] sm:$0xff] %v1065
      %1194 = vst [vmem:[%s224 + $0x270] sm:$0xff] %v1066
      %1195 = vst [vmem:[%s224 + $0x278] sm:$0xff] %v1067
      %1196 = vst [vmem:[%s224 + $0x280] sm:$0xff] %v1068
      %1197 = vst [vmem:[%s224 + $0x288] sm:$0xff] %v1069
      %1198 = vst [vmem:[%s224 + $0x290] sm:$0xff] %v1070
      %1199 = vst [vmem:[%s224 + $0x298] sm:$0xff] %v1071
      %1200 = vst [vmem:[%s224 + $0x2a0] sm:$0xff] %v1072
      %1201 = vst [vmem:[%s224 + $0x2a8] sm:$0xff] %v1073
      %1202 = vst [vmem:[%s224 + $0x2b0] sm:$0xff] %v1074
      %1203 = vst [vmem:[%s224 + $0x2b8] sm:$0xff] %v1075
      %1204 = vst [vmem:[%s224 + $0x2c0] sm:$0xff] %v1076
      %1205 = vst [vmem:[%s224 + $0x2c8] sm:$0xff] %v1077
      %1206 = vst [vmem:[%s224 + $0x2d0] sm:$0xff] %v1078
      %1207 = vst [vmem:[%s224 + $0x2d8] sm:$0xff] %v1079
      %1208 = vst [vmem:[%s224 + $0x2e0] sm:$0xff] %v1080
      %1209 = vst [vmem:[%s224 + $0x2e8] sm:$0xff] %v1081
      %1210 = vst [vmem:[%s224 + $0x2f0] sm:$0xff] %v1082
      %1211 = vst [vmem:[%s224 + $0x2f8] sm:$0xff] %v1083
      %1212 = vst [vmem:[%s224 + $0x300] sm:$0xff] %v1084
      %1213 = vst [vmem:[%s224 + $0x308] sm:$0xff] %v1085
      %1214 = vst [vmem:[%s224 + $0x310] sm:$0xff] %v1086
      %1215 = vst [vmem:[%s224 + $0x318] sm:$0xff] %v1087
      %1216 = vst [vmem:[%s224 + $0x320] sm:$0xff] %v1088
      %1217 = vst [vmem:[%s224 + $0x328] sm:$0xff] %v1089
      %1218 = vst [vmem:[%s224 + $0x330] sm:$0xff] %v1090
      %1219 = vst [vmem:[%s224 + $0x338] sm:$0xff] %v1091
      %1220 = vst [vmem:[%s224 + $0x340] sm:$0xff] %v1092
      %1221 = vst [vmem:[%s224 + $0x348] sm:$0xff] %v1093
      %1222 = vst [vmem:[%s224 + $0x350] sm:$0xff] %v1094
      %1223 = vst [vmem:[%s224 + $0x358] sm:$0xff] %v1095
      %1224 = vst [vmem:[%s224 + $0x360] sm:$0xff] %v1096
      %1225 = vst [vmem:[%s224 + $0x368] sm:$0xff] %v1097
      %1226 = vst [vmem:[%s224 + $0x370] sm:$0xff] %v1098
      %1227 = vst [vmem:[%s224 + $0x378] sm:$0xff] %v1099
      %1228 = vst [vmem:[%s224 + $0x380] sm:$0xff] %v1100
      %1229 = vst [vmem:[%s224 + $0x388] sm:$0xff] %v1101
      %1230 = vst [vmem:[%s224 + $0x390] sm:$0xff] %v1102
      %1231 = vst [vmem:[%s224 + $0x398] sm:$0xff] %v1103
      %1232 = vst [vmem:[%s224 + $0x3a0] sm:$0xff] %v1104
      %1233 = vst [vmem:[%s224 + $0x3a8] sm:$0xff] %v1105
      %1234 = vst [vmem:[%s224 + $0x3b0] sm:$0xff] %v1106
      %1235 = vst [vmem:[%s224 + $0x3b8] sm:$0xff] %v1107
      %1236 = vst [vmem:[%s224 + $0x3c0] sm:$0xff] %v1108
      %1237 = vst [vmem:[%s224 + $0x3c8] sm:$0xff] %v1109
      %1238 = vst [vmem:[%s224 + $0x3d0] sm:$0xff] %v1110
      %1239 = vst [vmem:[%s224 + $0x3d8] sm:$0xff] %v1111
      %1240 = vst [vmem:[%s224 + $0x3e0] sm:$0xff] %v1112
      %1241 = vst [vmem:[%s224 + $0x3e8] sm:$0xff] %v1113
      %1242 = vst [vmem:[%s224 + $0x3f0] sm:$0xff] %v1114
      %1243 = vst [vmem:[%s224 + $0x3f8] sm:$0xff] %v1115
      %p1244 = scmp.lt.s32.totalorder %s16, 1
      %s1245 = scalar_select %p1244, %s16, 1
      %s1246 = smul.addr %s1245, 128
      %s1247 = smul.addr %s1246, 8
      %s1248 = scalar_lea.vmem %s5, %s1247
      // Predicated region
      $region41: #{se_block.1} parent=39 // pred_check
        %p1249 = pneg %p144
      $region42: #{se_block.1} parent=39 // pred_check_branch
        %1251 = sbr.rel (%p1249) target = $region44
      $region43: #{se_block.1} parent=39 // pred_region
        _
      $region44: #{se_block.1} parent=39 // pred_fallthru
        _
    $region40: #{se_block.1} parent=5 // pred_fallthru
      _
    %p1252 = scmp.le.s32.totalorder 2, %s11
    // Predicated region
    $region45: #{se_block.1} parent=5 // pred_check
      %p1253 = pneg %p1252
    $region46: #{se_block.1} parent=5 // pred_check_branch
      %1255 = sbr.rel (%p1253) target = $region48
    $region47: #{se_block.1} parent=5 // pred_region
      %s1256 = ssub.s32 %s11, 2
      // Predicated region
      $region49: #{se_block.1} parent=47 // pred_check
        %p1257 = pneg %p150
      $region50: #{se_block.1} parent=47 // pred_check_branch
        %1259 = sbr.rel (%p1257) target = $region52
      $region51: #{se_block.1} parent=47 // pred_region
        %p1260 = scmp.lt.s32.totalorder %s17, 1
        %s1261 = scalar_select %p1260, %s17, 1
        %s1262 = smul.addr %s1261, 128
        %s1263 = smul.addr %s1262, 8
        %s1264 = scalar_lea.vmem %s5, %s1263
      $region52: #{se_block.1} parent=47 // pred_fallthru
        _
    $region48: #{se_block.1} parent=5 // pred_fallthru
      _
  $region6: #{se_block.1} parent=0 // loop_footer
    %s15 = sadd.s32 1, %s11
  $region7: #{se_block.1} parent=0 // loop_footer_branch
    %10 = sbr.rel target = $region3
  $region8: #{se_block.1} parent=0 // loop_exit
    _

</llo_original>
